<compile_context>
chip_gen: v5e
topology: v5e:2x2
jax: 0.10.0
libtpu: 0.0.40
codegen_flags: <defaults>
</compile_context>

<pallas_src>
import math
import functools

import jax
import jax.numpy as jnp
from jax.experimental import pallas as pl
from jax.experimental.pallas import tpu as pltpu


def _rp_kernel(emb_ref, out_ref, *, tile_rows, width, pad_width, num_buckets,
               max_distance):
    """One grid step emits `tile_rows` output rows, flattened on lanes.

    base[h, k] holds the bias value for distance d_k = (i0 + tile_rows-1) - k,
    so output row r (global i = i0 + r) is the static lane window
    base[:, tile_rows-1-r : tile_rows-1-r + width].
    """
    heads = emb_ref.shape[0]
    i0 = pl.program_id(0) * tile_rows

    # ---- per-tile diagonal table: bucket math on only ~(width + TL) lanes ----
    k = jax.lax.broadcasted_iota(jnp.int32, (heads, pad_width), 1)
    d = (i0 + tile_rows - 1) - k                       # d = i - j for some row
    n = jnp.maximum(d, 0)

    max_exact = num_buckets // 2
    is_small = n < max_exact
    # Clamp only to keep log() finite on lanes that take the small branch
    # anyway (the PyTorch module relies on torch.where discarding them).
    n_f = jnp.maximum(n, 1).astype(jnp.float32)
    val_if_large = max_exact + (
        jnp.log(n_f / max_exact) / math.log(max_distance / max_exact)
        * (num_buckets - max_exact)
    ).astype(jnp.int32)
    val_if_large = jnp.minimum(val_if_large, num_buckets - 1)
    bucket = jnp.where(is_small, n, val_if_large)      # (heads, pad_width) i32

    # ---- exact embedding gather: 32-way select (scale pre-folded on host) ---
    emb = emb_ref[...]                                  # (heads, num_buckets)
    base = jnp.zeros((heads, pad_width), jnp.float32)
    for b in range(num_buckets):
        base = jnp.where(bucket == b, emb[:, b:b + 1], base)

    # ---- Toeplitz expansion: each row is a shifted lane window of `base` ----
    for r in range(tile_rows):
        start = tile_rows - 1 - r                       # static per row
        out_ref[:, r * width:(r + 1) * width] = (
            base[:, start:start + width].astype(out_ref.dtype))


def _choose_tile_rows(seq_len, width, heads, itemsize, vmem_bytes):
    """Largest row tile with TL | L, a lane-dense output block
    (TL*W % 128 == 0, or the full array), block bytes under a generation-aware
    budget, preferring >= 2 grid steps (v7x has two TensorCores)."""
    budget = (8 << 20) if vmem_bytes >= (96 << 20) else (4 << 20)
    row_bytes = heads * width * itemsize
    max_rows = max(1, budget // row_bytes)

    def ok(tl):
        return seq_len % tl == 0 and ((tl * width) % 128 == 0 or tl == seq_len)

    tl = seq_len                                        # fallback: single block
    for cand in range(min(seq_len, max_rows), 0, -1):
        if ok(cand):
            tl = cand
            break
    if seq_len // tl < 2:                               # give v7x core 1 work
        for cand in range(tl - 1, 0, -1):
            if seq_len % cand == 0 and (cand * width) % 128 == 0:
                tl = cand
                break
    # Note: very large prime seq_len could fall back to a single full block;
    # typical (power-of-two / multiple-of-64) lengths always tile.
    return tl


def relative_position_forward(emb, seq_len, *, rp_scale, num_buckets,
                              rp_max_distance, out_dtype=jnp.float32):
    """emb: (num_buckets, heads) f32 embedding table (nn.Embedding weight).
    Returns (1, heads, seq_len, 2*seq_len), matching the PyTorch module."""
    nb, heads = emb.shape
    assert nb == num_buckets
    L = int(seq_len)
    W = 2 * L

    try:
        vmem_cap = int(getattr(pltpu.get_tpu_info(), "vmem_capacity_bytes",
                               64 << 20))
    except Exception:
        vmem_cap = 64 << 20

    itemsize = jnp.dtype(out_dtype).itemsize
    TL = _choose_tile_rows(L, W, heads, itemsize, vmem_cap)
    grid = (L // TL,)
    pad_width = ((W + TL - 1 + 127) // 128) * 128       # per-tile diag width

    block_bytes = heads * TL * W * itemsize
    vmem_limit = int(min(vmem_cap * 3 // 4, max(32 << 20, 4 * block_bytes)))

    # Layout plumbing + scale fold on the tiny (heads, 32) table.
    emb_t = (jnp.transpose(emb) * rp_scale).astype(jnp.float32)

    kernel = functools.partial(
        _rp_kernel, tile_rows=TL, width=W, pad_width=pad_width,
        num_buckets=num_buckets, max_distance=rp_max_distance)

    flat = pl.pallas_call(
        kernel,
        out_shape=jax.ShapeDtypeStruct((heads, L * W), out_dtype),
        grid=grid,
        in_specs=[pl.BlockSpec((heads, num_buckets), lambda t: (0, 0))],
        out_specs=pl.BlockSpec((heads, TL * W), lambda t: (0, t)),
        compiler_params=pltpu.CompilerParams(
            dimension_semantics=("parallel",),
            vmem_limit_bytes=vmem_limit,
        ),
    )(emb_t)

    # Free row-major reshape; no transpose, no extra HBM pass.
    return flat.reshape(heads, L, W)[None]


def _reference(emb, seq_len, rp_scale, num_buckets, rp_max_distance):
    # Pure-JAX reference mirroring the PyTorch module.
    i = jnp.arange(seq_len)[:, None]
    j = jnp.arange(2 * seq_len)[None, :]
    n = jnp.maximum(i - j, 0)
    max_exact = num_buckets // 2
    is_small = n < max_exact
    n_f = jnp.maximum(n, 1).astype(jnp.float32)
    val_if_large = max_exact + (
        jnp.log(n_f / max_exact) / math.log(rp_max_distance / max_exact)
        * (num_buckets - max_exact)
    ).astype(jnp.int32)
    val_if_large = jnp.minimum(val_if_large, num_buckets - 1)
    bucket = jnp.where(is_small, n, val_if_large)
    vals = emb[bucket]                                   # (L, 2L, heads)
    return jnp.transpose(vals, (2, 0, 1))[None] * rp_scale


if __name__ == "__main__":
    # Module hyperparameters (defaults of __init__), small test sequence.
    rp_scale = 0.5
    num_buckets = 32
    rp_max_distance = 128
    heads = 8
    seq_len = 8

    # Deterministic parameter init (nn.Embedding default is N(0, 1)).
    key = jax.random.PRNGKey(0)
    emb = jax.random.normal(key, (num_buckets, heads), dtype=jnp.float32)

    out = relative_position_forward(
        emb, seq_len,
        rp_scale=rp_scale, num_buckets=num_buckets,
        rp_max_distance=rp_max_distance,
    )
    out = jax.block_until_ready(out)

    ref = _reference(emb, seq_len, rp_scale, num_buckets, rp_max_distance)
    assert out.shape == (1, heads, seq_len, 2 * seq_len), out.shape
    assert jnp.allclose(out, ref, atol=1e-6), "mismatch vs reference"

    print("KERNEL_OK")
</pallas_src>

<mosaic_0001>
module attributes {stable_mosaic.version = 11 : i64} {
  func.func @_rp_kernel(%arg0: i32, %arg1: memref<8x32xf32, #tpu.memory_space<vmem>>, %arg2: memref<8x128xf32, #tpu.memory_space<vmem>>) attributes {dimension_semantics = [#tpu.dimension_semantics<parallel>], iteration_bounds = array<i64: 1>, scalar_prefetch = 0 : i64, scratch_operands = 0 : i64, tpu.core_type = #tpu.core_type<tc>, window_params = [{pipeline_mode = #tpu.pipeline_mode<synchronous>, transform_indices = @transform_0, window_bounds = array<i64: 8, 32>}, {transform_indices = @transform_1, window_bounds = array<i64: 8, 128>}]} {
    %c8_i32 = arith.constant 8 : i32
    %0 = arith.muli %arg0, %c8_i32 : i32
    %1 = tpu.iota {dimensions = array<i32: 1>} : vector<8x128xi32>
    %c8_i32_0 = arith.constant 8 : i32
    %2 = arith.addi %0, %c8_i32_0 : i32
    %c1_i32 = arith.constant 1 : i32
    %3 = arith.subi %2, %c1_i32 : i32
    %4 = vector.broadcast %3 : i32 to vector<8x128xi32>
    %5 = arith.subi %4, %1 : vector<8x128xi32>
    %c0_i32 = arith.constant 0 : i32
    %6 = vector.broadcast %c0_i32 : i32 to vector<8x128xi32>
    %7 = arith.maxsi %5, %6 : vector<8x128xi32>
    %c16_i32 = arith.constant 16 : i32
    %8 = vector.broadcast %c16_i32 : i32 to vector<8x128xi32>
    %9 = arith.cmpi slt, %7, %8 : vector<8x128xi32>
    %c1_i32_1 = arith.constant 1 : i32
    %10 = vector.broadcast %c1_i32_1 : i32 to vector<8x128xi32>
    %11 = arith.maxsi %7, %10 : vector<8x128xi32>
    %12 = arith.sitofp %11 : vector<8x128xi32> to vector<8x128xf32>
    %cst = arith.constant 1.600000e+01 : f32
    %13 = vector.broadcast %cst : f32 to vector<8x128xf32>
    %14 = arith.divf %12, %13 : vector<8x128xf32>
    %15 = math.log %14 : vector<8x128xf32>
    %cst_2 = arith.constant 2.07944155 : f32
    %16 = vector.broadcast %cst_2 : f32 to vector<8x128xf32>
    %17 = arith.divf %15, %16 : vector<8x128xf32>
    %cst_3 = arith.constant 1.600000e+01 : f32
    %18 = vector.broadcast %cst_3 : f32 to vector<8x128xf32>
    %19 = arith.mulf %17, %18 : vector<8x128xf32>
    %20 = arith.fptosi %19 : vector<8x128xf32> to vector<8x128xi32>
    %c16_i32_4 = arith.constant 16 : i32
    %21 = vector.broadcast %c16_i32_4 : i32 to vector<8x128xi32>
    %22 = arith.addi %21, %20 : vector<8x128xi32>
    %c31_i32 = arith.constant 31 : i32
    %23 = vector.broadcast %c31_i32 : i32 to vector<8x128xi32>
    %24 = arith.minsi %22, %23 : vector<8x128xi32>
    %25 = arith.select %9, %7, %24 : vector<8x128xi1>, vector<8x128xi32>
    %c0 = arith.constant 0 : index
    %c0_5 = arith.constant 0 : index
    %26 = vector.load %arg1[%c0, %c0_5] : memref<8x32xf32, #tpu.memory_space<vmem>>, vector<8x32xf32>
    %cst_6 = arith.constant 0.000000e+00 : f32
    %27 = vector.broadcast %cst_6 : f32 to vector<8x128xf32>
    %c0_i32_7 = arith.constant 0 : i32
    %28 = vector.broadcast %c0_i32_7 : i32 to vector<8x128xi32>
    %29 = arith.cmpi eq, %25, %28 : vector<8x128xi32>
    %30 = vector.extract_strided_slice %26 {offsets = [0, 0], sizes = [8, 1], strides = [1, 1]} : vector<8x32xf32> to vector<8x1xf32>
    %31 = vector.shape_cast %30 : vector<8x1xf32> to vector<8x1xf32>
    %32 = vector.broadcast %31 : vector<8x1xf32> to vector<8x128xf32>
    %33 = arith.select %29, %32, %27 : vector<8x128xi1>, vector<8x128xf32>
    %c1_i32_8 = arith.constant 1 : i32
    %34 = vector.broadcast %c1_i32_8 : i32 to vector<8x128xi32>
    %35 = arith.cmpi eq, %25, %34 : vector<8x128xi32>
    %36 = vector.extract_strided_slice %26 {offsets = [0, 1], sizes = [8, 1], strides = [1, 1]} : vector<8x32xf32> to vector<8x1xf32>
    %37 = vector.shape_cast %36 : vector<8x1xf32> to vector<8x1xf32>
    %38 = vector.broadcast %37 : vector<8x1xf32> to vector<8x128xf32>
    %39 = arith.select %35, %38, %33 : vector<8x128xi1>, vector<8x128xf32>
    %c2_i32 = arith.constant 2 : i32
    %40 = vector.broadcast %c2_i32 : i32 to vector<8x128xi32>
    %41 = arith.cmpi eq, %25, %40 : vector<8x128xi32>
    %42 = vector.extract_strided_slice %26 {offsets = [0, 2], sizes = [8, 1], strides = [1, 1]} : vector<8x32xf32> to vector<8x1xf32>
    %43 = vector.shape_cast %42 : vector<8x1xf32> to vector<8x1xf32>
    %44 = vector.broadcast %43 : vector<8x1xf32> to vector<8x128xf32>
    %45 = arith.select %41, %44, %39 : vector<8x128xi1>, vector<8x128xf32>
    %c3_i32 = arith.constant 3 : i32
    %46 = vector.broadcast %c3_i32 : i32 to vector<8x128xi32>
    %47 = arith.cmpi eq, %25, %46 : vector<8x128xi32>
    %48 = vector.extract_strided_slice %26 {offsets = [0, 3], sizes = [8, 1], strides = [1, 1]} : vector<8x32xf32> to vector<8x1xf32>
    %49 = vector.shape_cast %48 : vector<8x1xf32> to vector<8x1xf32>
    %50 = vector.broadcast %49 : vector<8x1xf32> to vector<8x128xf32>
    %51 = arith.select %47, %50, %45 : vector<8x128xi1>, vector<8x128xf32>
    %c4_i32 = arith.constant 4 : i32
    %52 = vector.broadcast %c4_i32 : i32 to vector<8x128xi32>
    %53 = arith.cmpi eq, %25, %52 : vector<8x128xi32>
    %54 = vector.extract_strided_slice %26 {offsets = [0, 4], sizes = [8, 1], strides = [1, 1]} : vector<8x32xf32> to vector<8x1xf32>
    %55 = vector.shape_cast %54 : vector<8x1xf32> to vector<8x1xf32>
    %56 = vector.broadcast %55 : vector<8x1xf32> to vector<8x128xf32>
    %57 = arith.select %53, %56, %51 : vector<8x128xi1>, vector<8x128xf32>
    %c5_i32 = arith.constant 5 : i32
    %58 = vector.broadcast %c5_i32 : i32 to vector<8x128xi32>
    %59 = arith.cmpi eq, %25, %58 : vector<8x128xi32>
    %60 = vector.extract_strided_slice %26 {offsets = [0, 5], sizes = [8, 1], strides = [1, 1]} : vector<8x32xf32> to vector<8x1xf32>
    %61 = vector.shape_cast %60 : vector<8x1xf32> to vector<8x1xf32>
    %62 = vector.broadcast %61 : vector<8x1xf32> to vector<8x128xf32>
    %63 = arith.select %59, %62, %57 : vector<8x128xi1>, vector<8x128xf32>
    %c6_i32 = arith.constant 6 : i32
    %64 = vector.broadcast %c6_i32 : i32 to vector<8x128xi32>
    %65 = arith.cmpi eq, %25, %64 : vector<8x128xi32>
    %66 = vector.extract_strided_slice %26 {offsets = [0, 6], sizes = [8, 1], strides = [1, 1]} : vector<8x32xf32> to vector<8x1xf32>
    %67 = vector.shape_cast %66 : vector<8x1xf32> to vector<8x1xf32>
    %68 = vector.broadcast %67 : vector<8x1xf32> to vector<8x128xf32>
    %69 = arith.select %65, %68, %63 : vector<8x128xi1>, vector<8x128xf32>
    %c7_i32 = arith.constant 7 : i32
    %70 = vector.broadcast %c7_i32 : i32 to vector<8x128xi32>
    %71 = arith.cmpi eq, %25, %70 : vector<8x128xi32>
    %72 = vector.extract_strided_slice %26 {offsets = [0, 7], sizes = [8, 1], strides = [1, 1]} : vector<8x32xf32> to vector<8x1xf32>
    %73 = vector.shape_cast %72 : vector<8x1xf32> to vector<8x1xf32>
    %74 = vector.broadcast %73 : vector<8x1xf32> to vector<8x128xf32>
    %75 = arith.select %71, %74, %69 : vector<8x128xi1>, vector<8x128xf32>
    %c8_i32_9 = arith.constant 8 : i32
    %76 = vector.broadcast %c8_i32_9 : i32 to vector<8x128xi32>
    %77 = arith.cmpi eq, %25, %76 : vector<8x128xi32>
    %78 = vector.extract_strided_slice %26 {offsets = [0, 8], sizes = [8, 1], strides = [1, 1]} : vector<8x32xf32> to vector<8x1xf32>
    %79 = vector.shape_cast %78 : vector<8x1xf32> to vector<8x1xf32>
    %80 = vector.broadcast %79 : vector<8x1xf32> to vector<8x128xf32>
    %81 = arith.select %77, %80, %75 : vector<8x128xi1>, vector<8x128xf32>
    %c9_i32 = arith.constant 9 : i32
    %82 = vector.broadcast %c9_i32 : i32 to vector<8x128xi32>
    %83 = arith.cmpi eq, %25, %82 : vector<8x128xi32>
    %84 = vector.extract_strided_slice %26 {offsets = [0, 9], sizes = [8, 1], strides = [1, 1]} : vector<8x32xf32> to vector<8x1xf32>
    %85 = vector.shape_cast %84 : vector<8x1xf32> to vector<8x1xf32>
    %86 = vector.broadcast %85 : vector<8x1xf32> to vector<8x128xf32>
    %87 = arith.select %83, %86, %81 : vector<8x128xi1>, vector<8x128xf32>
    %c10_i32 = arith.constant 10 : i32
    %88 = vector.broadcast %c10_i32 : i32 to vector<8x128xi32>
    %89 = arith.cmpi eq, %25, %88 : vector<8x128xi32>
    %90 = vector.extract_strided_slice %26 {offsets = [0, 10], sizes = [8, 1], strides = [1, 1]} : vector<8x32xf32> to vector<8x1xf32>
    %91 = vector.shape_cast %90 : vector<8x1xf32> to vector<8x1xf32>
    %92 = vector.broadcast %91 : vector<8x1xf32> to vector<8x128xf32>
    %93 = arith.select %89, %92, %87 : vector<8x128xi1>, vector<8x128xf32>
    %c11_i32 = arith.constant 11 : i32
    %94 = vector.broadcast %c11_i32 : i32 to vector<8x128xi32>
    %95 = arith.cmpi eq, %25, %94 : vector<8x128xi32>
    %96 = vector.extract_strided_slice %26 {offsets = [0, 11], sizes = [8, 1], strides = [1, 1]} : vector<8x32xf32> to vector<8x1xf32>
    %97 = vector.shape_cast %96 : vector<8x1xf32> to vector<8x1xf32>
    %98 = vector.broadcast %97 : vector<8x1xf32> to vector<8x128xf32>
    %99 = arith.select %95, %98, %93 : vector<8x128xi1>, vector<8x128xf32>
    %c12_i32 = arith.constant 12 : i32
    %100 = vector.broadcast %c12_i32 : i32 to vector<8x128xi32>
    %101 = arith.cmpi eq, %25, %100 : vector<8x128xi32>
    %102 = vector.extract_strided_slice %26 {offsets = [0, 12], sizes = [8, 1], strides = [1, 1]} : vector<8x32xf32> to vector<8x1xf32>
    %103 = vector.shape_cast %102 : vector<8x1xf32> to vector<8x1xf32>
    %104 = vector.broadcast %103 : vector<8x1xf32> to vector<8x128xf32>
    %105 = arith.select %101, %104, %99 : vector<8x128xi1>, vector<8x128xf32>
    %c13_i32 = arith.constant 13 : i32
    %106 = vector.broadcast %c13_i32 : i32 to vector<8x128xi32>
    %107 = arith.cmpi eq, %25, %106 : vector<8x128xi32>
    %108 = vector.extract_strided_slice %26 {offsets = [0, 13], sizes = [8, 1], strides = [1, 1]} : vector<8x32xf32> to vector<8x1xf32>
    %109 = vector.shape_cast %108 : vector<8x1xf32> to vector<8x1xf32>
    %110 = vector.broadcast %109 : vector<8x1xf32> to vector<8x128xf32>
    %111 = arith.select %107, %110, %105 : vector<8x128xi1>, vector<8x128xf32>
    %c14_i32 = arith.constant 14 : i32
    %112 = vector.broadcast %c14_i32 : i32 to vector<8x128xi32>
    %113 = arith.cmpi eq, %25, %112 : vector<8x128xi32>
    %114 = vector.extract_strided_slice %26 {offsets = [0, 14], sizes = [8, 1], strides = [1, 1]} : vector<8x32xf32> to vector<8x1xf32>
    %115 = vector.shape_cast %114 : vector<8x1xf32> to vector<8x1xf32>
    %116 = vector.broadcast %115 : vector<8x1xf32> to vector<8x128xf32>
    %117 = arith.select %113, %116, %111 : vector<8x128xi1>, vector<8x128xf32>
    %c15_i32 = arith.constant 15 : i32
    %118 = vector.broadcast %c15_i32 : i32 to vector<8x128xi32>
    %119 = arith.cmpi eq, %25, %118 : vector<8x128xi32>
    %120 = vector.extract_strided_slice %26 {offsets = [0, 15], sizes = [8, 1], strides = [1, 1]} : vector<8x32xf32> to vector<8x1xf32>
    %121 = vector.shape_cast %120 : vector<8x1xf32> to vector<8x1xf32>
    %122 = vector.broadcast %121 : vector<8x1xf32> to vector<8x128xf32>
    %123 = arith.select %119, %122, %117 : vector<8x128xi1>, vector<8x128xf32>
    %c16_i32_10 = arith.constant 16 : i32
    %124 = vector.broadcast %c16_i32_10 : i32 to vector<8x128xi32>
    %125 = arith.cmpi eq, %25, %124 : vector<8x128xi32>
    %126 = vector.extract_strided_slice %26 {offsets = [0, 16], sizes = [8, 1], strides = [1, 1]} : vector<8x32xf32> to vector<8x1xf32>
    %127 = vector.shape_cast %126 : vector<8x1xf32> to vector<8x1xf32>
    %128 = vector.broadcast %127 : vector<8x1xf32> to vector<8x128xf32>
    %129 = arith.select %125, %128, %123 : vector<8x128xi1>, vector<8x128xf32>
    %c17_i32 = arith.constant 17 : i32
    %130 = vector.broadcast %c17_i32 : i32 to vector<8x128xi32>
    %131 = arith.cmpi eq, %25, %130 : vector<8x128xi32>
    %132 = vector.extract_strided_slice %26 {offsets = [0, 17], sizes = [8, 1], strides = [1, 1]} : vector<8x32xf32> to vector<8x1xf32>
    %133 = vector.shape_cast %132 : vector<8x1xf32> to vector<8x1xf32>
    %134 = vector.broadcast %133 : vector<8x1xf32> to vector<8x128xf32>
    %135 = arith.select %131, %134, %129 : vector<8x128xi1>, vector<8x128xf32>
    %c18_i32 = arith.constant 18 : i32
    %136 = vector.broadcast %c18_i32 : i32 to vector<8x128xi32>
    %137 = arith.cmpi eq, %25, %136 : vector<8x128xi32>
    %138 = vector.extract_strided_slice %26 {offsets = [0, 18], sizes = [8, 1], strides = [1, 1]} : vector<8x32xf32> to vector<8x1xf32>
    %139 = vector.shape_cast %138 : vector<8x1xf32> to vector<8x1xf32>
    %140 = vector.broadcast %139 : vector<8x1xf32> to vector<8x128xf32>
    %141 = arith.select %137, %140, %135 : vector<8x128xi1>, vector<8x128xf32>
    %c19_i32 = arith.constant 19 : i32
    %142 = vector.broadcast %c19_i32 : i32 to vector<8x128xi32>
    %143 = arith.cmpi eq, %25, %142 : vector<8x128xi32>
    %144 = vector.extract_strided_slice %26 {offsets = [0, 19], sizes = [8, 1], strides = [1, 1]} : vector<8x32xf32> to vector<8x1xf32>
    %145 = vector.shape_cast %144 : vector<8x1xf32> to vector<8x1xf32>
    %146 = vector.broadcast %145 : vector<8x1xf32> to vector<8x128xf32>
    %147 = arith.select %143, %146, %141 : vector<8x128xi1>, vector<8x128xf32>
    %c20_i32 = arith.constant 20 : i32
    %148 = vector.broadcast %c20_i32 : i32 to vector<8x128xi32>
    %149 = arith.cmpi eq, %25, %148 : vector<8x128xi32>
    %150 = vector.extract_strided_slice %26 {offsets = [0, 20], sizes = [8, 1], strides = [1, 1]} : vector<8x32xf32> to vector<8x1xf32>
    %151 = vector.shape_cast %150 : vector<8x1xf32> to vector<8x1xf32>
    %152 = vector.broadcast %151 : vector<8x1xf32> to vector<8x128xf32>
    %153 = arith.select %149, %152, %147 : vector<8x128xi1>, vector<8x128xf32>
    %c21_i32 = arith.constant 21 : i32
    %154 = vector.broadcast %c21_i32 : i32 to vector<8x128xi32>
    %155 = arith.cmpi eq, %25, %154 : vector<8x128xi32>
    %156 = vector.extract_strided_slice %26 {offsets = [0, 21], sizes = [8, 1], strides = [1, 1]} : vector<8x32xf32> to vector<8x1xf32>
    %157 = vector.shape_cast %156 : vector<8x1xf32> to vector<8x1xf32>
    %158 = vector.broadcast %157 : vector<8x1xf32> to vector<8x128xf32>
    %159 = arith.select %155, %158, %153 : vector<8x128xi1>, vector<8x128xf32>
    %c22_i32 = arith.constant 22 : i32
    %160 = vector.broadcast %c22_i32 : i32 to vector<8x128xi32>
    %161 = arith.cmpi eq, %25, %160 : vector<8x128xi32>
    %162 = vector.extract_strided_slice %26 {offsets = [0, 22], sizes = [8, 1], strides = [1, 1]} : vector<8x32xf32> to vector<8x1xf32>
    %163 = vector.shape_cast %162 : vector<8x1xf32> to vector<8x1xf32>
    %164 = vector.broadcast %163 : vector<8x1xf32> to vector<8x128xf32>
    %165 = arith.select %161, %164, %159 : vector<8x128xi1>, vector<8x128xf32>
    %c23_i32 = arith.constant 23 : i32
    %166 = vector.broadcast %c23_i32 : i32 to vector<8x128xi32>
    %167 = arith.cmpi eq, %25, %166 : vector<8x128xi32>
    %168 = vector.extract_strided_slice %26 {offsets = [0, 23], sizes = [8, 1], strides = [1, 1]} : vector<8x32xf32> to vector<8x1xf32>
    %169 = vector.shape_cast %168 : vector<8x1xf32> to vector<8x1xf32>
    %170 = vector.broadcast %169 : vector<8x1xf32> to vector<8x128xf32>
    %171 = arith.select %167, %170, %165 : vector<8x128xi1>, vector<8x128xf32>
    %c24_i32 = arith.constant 24 : i32
    %172 = vector.broadcast %c24_i32 : i32 to vector<8x128xi32>
    %173 = arith.cmpi eq, %25, %172 : vector<8x128xi32>
    %174 = vector.extract_strided_slice %26 {offsets = [0, 24], sizes = [8, 1], strides = [1, 1]} : vector<8x32xf32> to vector<8x1xf32>
    %175 = vector.shape_cast %174 : vector<8x1xf32> to vector<8x1xf32>
    %176 = vector.broadcast %175 : vector<8x1xf32> to vector<8x128xf32>
    %177 = arith.select %173, %176, %171 : vector<8x128xi1>, vector<8x128xf32>
    %c25_i32 = arith.constant 25 : i32
    %178 = vector.broadcast %c25_i32 : i32 to vector<8x128xi32>
    %179 = arith.cmpi eq, %25, %178 : vector<8x128xi32>
    %180 = vector.extract_strided_slice %26 {offsets = [0, 25], sizes = [8, 1], strides = [1, 1]} : vector<8x32xf32> to vector<8x1xf32>
    %181 = vector.shape_cast %180 : vector<8x1xf32> to vector<8x1xf32>
    %182 = vector.broadcast %181 : vector<8x1xf32> to vector<8x128xf32>
    %183 = arith.select %179, %182, %177 : vector<8x128xi1>, vector<8x128xf32>
    %c26_i32 = arith.constant 26 : i32
    %184 = vector.broadcast %c26_i32 : i32 to vector<8x128xi32>
    %185 = arith.cmpi eq, %25, %184 : vector<8x128xi32>
    %186 = vector.extract_strided_slice %26 {offsets = [0, 26], sizes = [8, 1], strides = [1, 1]} : vector<8x32xf32> to vector<8x1xf32>
    %187 = vector.shape_cast %186 : vector<8x1xf32> to vector<8x1xf32>
    %188 = vector.broadcast %187 : vector<8x1xf32> to vector<8x128xf32>
    %189 = arith.select %185, %188, %183 : vector<8x128xi1>, vector<8x128xf32>
    %c27_i32 = arith.constant 27 : i32
    %190 = vector.broadcast %c27_i32 : i32 to vector<8x128xi32>
    %191 = arith.cmpi eq, %25, %190 : vector<8x128xi32>
    %192 = vector.extract_strided_slice %26 {offsets = [0, 27], sizes = [8, 1], strides = [1, 1]} : vector<8x32xf32> to vector<8x1xf32>
    %193 = vector.shape_cast %192 : vector<8x1xf32> to vector<8x1xf32>
    %194 = vector.broadcast %193 : vector<8x1xf32> to vector<8x128xf32>
    %195 = arith.select %191, %194, %189 : vector<8x128xi1>, vector<8x128xf32>
    %c28_i32 = arith.constant 28 : i32
    %196 = vector.broadcast %c28_i32 : i32 to vector<8x128xi32>
    %197 = arith.cmpi eq, %25, %196 : vector<8x128xi32>
    %198 = vector.extract_strided_slice %26 {offsets = [0, 28], sizes = [8, 1], strides = [1, 1]} : vector<8x32xf32> to vector<8x1xf32>
    %199 = vector.shape_cast %198 : vector<8x1xf32> to vector<8x1xf32>
    %200 = vector.broadcast %199 : vector<8x1xf32> to vector<8x128xf32>
    %201 = arith.select %197, %200, %195 : vector<8x128xi1>, vector<8x128xf32>
    %c29_i32 = arith.constant 29 : i32
    %202 = vector.broadcast %c29_i32 : i32 to vector<8x128xi32>
    %203 = arith.cmpi eq, %25, %202 : vector<8x128xi32>
    %204 = vector.extract_strided_slice %26 {offsets = [0, 29], sizes = [8, 1], strides = [1, 1]} : vector<8x32xf32> to vector<8x1xf32>
    %205 = vector.shape_cast %204 : vector<8x1xf32> to vector<8x1xf32>
    %206 = vector.broadcast %205 : vector<8x1xf32> to vector<8x128xf32>
    %207 = arith.select %203, %206, %201 : vector<8x128xi1>, vector<8x128xf32>
    %c30_i32 = arith.constant 30 : i32
    %208 = vector.broadcast %c30_i32 : i32 to vector<8x128xi32>
    %209 = arith.cmpi eq, %25, %208 : vector<8x128xi32>
    %210 = vector.extract_strided_slice %26 {offsets = [0, 30], sizes = [8, 1], strides = [1, 1]} : vector<8x32xf32> to vector<8x1xf32>
    %211 = vector.shape_cast %210 : vector<8x1xf32> to vector<8x1xf32>
    %212 = vector.broadcast %211 : vector<8x1xf32> to vector<8x128xf32>
    %213 = arith.select %209, %212, %207 : vector<8x128xi1>, vector<8x128xf32>
    %c31_i32_11 = arith.constant 31 : i32
    %214 = vector.broadcast %c31_i32_11 : i32 to vector<8x128xi32>
    %215 = arith.cmpi eq, %25, %214 : vector<8x128xi32>
    %216 = vector.extract_strided_slice %26 {offsets = [0, 31], sizes = [8, 1], strides = [1, 1]} : vector<8x32xf32> to vector<8x1xf32>
    %217 = vector.shape_cast %216 : vector<8x1xf32> to vector<8x1xf32>
    %218 = vector.broadcast %217 : vector<8x1xf32> to vector<8x128xf32>
    %219 = arith.select %215, %218, %213 : vector<8x128xi1>, vector<8x128xf32>
    %220 = vector.extract_strided_slice %219 {offsets = [0, 7], sizes = [8, 16], strides = [1, 1]} : vector<8x128xf32> to vector<8x16xf32>
    %c0_12 = arith.constant 0 : index
    %c0_13 = arith.constant 0 : index
    %221 = vector.load %arg2[%c0_12, %c0_13] : memref<8x128xf32, #tpu.memory_space<vmem>>, vector<8x16xf32>
    tpu.vector_store %arg2[%c0_12, %c0_13], %220 {strides = array<i32>} : memref<8x128xf32, #tpu.memory_space<vmem>>, vector<8x16xf32>,
    %222 = vector.extract_strided_slice %219 {offsets = [0, 6], sizes = [8, 16], strides = [1, 1]} : vector<8x128xf32> to vector<8x16xf32>
    %c0_14 = arith.constant 0 : index
    %c16 = arith.constant 16 : index
    %223 = vector.load %arg2[%c0_14, %c16] : memref<8x128xf32, #tpu.memory_space<vmem>>, vector<8x16xf32>
    tpu.vector_store %arg2[%c0_14, %c16], %222 {strides = array<i32>} : memref<8x128xf32, #tpu.memory_space<vmem>>, vector<8x16xf32>,
    %224 = vector.extract_strided_slice %219 {offsets = [0, 5], sizes = [8, 16], strides = [1, 1]} : vector<8x128xf32> to vector<8x16xf32>
    %c0_15 = arith.constant 0 : index
    %c32 = arith.constant 32 : index
    %225 = vector.load %arg2[%c0_15, %c32] : memref<8x128xf32, #tpu.memory_space<vmem>>, vector<8x16xf32>
    tpu.vector_store %arg2[%c0_15, %c32], %224 {strides = array<i32>} : memref<8x128xf32, #tpu.memory_space<vmem>>, vector<8x16xf32>,
    %226 = vector.extract_strided_slice %219 {offsets = [0, 4], sizes = [8, 16], strides = [1, 1]} : vector<8x128xf32> to vector<8x16xf32>
    %c0_16 = arith.constant 0 : index
    %c48 = arith.constant 48 : index
    %227 = vector.load %arg2[%c0_16, %c48] : memref<8x128xf32, #tpu.memory_space<vmem>>, vector<8x16xf32>
    tpu.vector_store %arg2[%c0_16, %c48], %226 {strides = array<i32>} : memref<8x128xf32, #tpu.memory_space<vmem>>, vector<8x16xf32>,
    %228 = vector.extract_strided_slice %219 {offsets = [0, 3], sizes = [8, 16], strides = [1, 1]} : vector<8x128xf32> to vector<8x16xf32>
    %c0_17 = arith.constant 0 : index
    %c64 = arith.constant 64 : index
    %229 = vector.load %arg2[%c0_17, %c64] : memref<8x128xf32, #tpu.memory_space<vmem>>, vector<8x16xf32>
    tpu.vector_store %arg2[%c0_17, %c64], %228 {strides = array<i32>} : memref<8x128xf32, #tpu.memory_space<vmem>>, vector<8x16xf32>,
    %230 = vector.extract_strided_slice %219 {offsets = [0, 2], sizes = [8, 16], strides = [1, 1]} : vector<8x128xf32> to vector<8x16xf32>
    %c0_18 = arith.constant 0 : index
    %c80 = arith.constant 80 : index
    %231 = vector.load %arg2[%c0_18, %c80] : memref<8x128xf32, #tpu.memory_space<vmem>>, vector<8x16xf32>
    tpu.vector_store %arg2[%c0_18, %c80], %230 {strides = array<i32>} : memref<8x128xf32, #tpu.memory_space<vmem>>, vector<8x16xf32>,
    %232 = vector.extract_strided_slice %219 {offsets = [0, 1], sizes = [8, 16], strides = [1, 1]} : vector<8x128xf32> to vector<8x16xf32>
    %c0_19 = arith.constant 0 : index
    %c96 = arith.constant 96 : index
    %233 = vector.load %arg2[%c0_19, %c96] : memref<8x128xf32, #tpu.memory_space<vmem>>, vector<8x16xf32>
    tpu.vector_store %arg2[%c0_19, %c96], %232 {strides = array<i32>} : memref<8x128xf32, #tpu.memory_space<vmem>>, vector<8x16xf32>,
    %234 = vector.extract_strided_slice %219 {offsets = [0, 0], sizes = [8, 16], strides = [1, 1]} : vector<8x128xf32> to vector<8x16xf32>
    %c0_20 = arith.constant 0 : index
    %c112 = arith.constant 112 : index
    %235 = vector.load %arg2[%c0_20, %c112] : memref<8x128xf32, #tpu.memory_space<vmem>>, vector<8x16xf32>
    tpu.vector_store %arg2[%c0_20, %c112], %234 {strides = array<i32>} : memref<8x128xf32, #tpu.memory_space<vmem>>, vector<8x16xf32>,
    return
  }
  func.func @transform_0(%arg0: i32) -> (i32, i32) {
    %c0_i32 = arith.constant 0 : i32
    %c0_i32_0 = arith.constant 0 : i32
    %c0_i32_1 = arith.constant 0 : i32
    return %c0_i32, %c0_i32_0 : i32, i32
  }
  func.func @transform_1(%arg0: i32) -> (i32, i32) {
    %c0_i32 = arith.constant 0 : i32
    %c0_i32_0 = arith.constant 0 : i32
    return %c0_i32, %arg0 : i32, i32
  }
}

</mosaic_0001>

<llo_original>
// kernel: tpu_custom_call.1
$region0: #{tpu_custom_call.1}
  #allocation0 [shape = 'u32[]', space=smem, size = 0x4, offset = 0x4, fixed_abs, tag = 'smem constant byte address 0x4 - core index']
  #allocation1 [shape = 'u32[72,128]{1,0:T(1,128)}', space=vmem, size = 0x9000, scoped, tag = 'internal scratch']
  %s0 = inlined_call_operand.hbm [shape: f32[8,32], index: 0, kind: input, shape index: {}]
  %s1 = inlined_call_operand.hbm [shape: f32[8,128], index: 1, kind: output, shape index: {}]
  %s2 = sld [smem:[#allocation0]]
  $region18: #{tpu_custom_call.1} parent=0
    _
  %s4 = ssub.s32 1, %s2
  %s5 = scalar_select 0, %s4, %s2
  $region1: #{tpu_custom_call.1} parent=0
    #allocation2 [shape = 'u8[4096]{0}', space=vmem, size = 0x1000, scoped, tag = 'input window, operand 0, single buffered']
    #allocation3 [shape = 's32[1]{0}', space=sflag, size = 0x4, scoped, tag = 'scoped memory for tpu_custom_call.1']
    #allocation4 [shape = 's32[1]{0}', space=sflag, size = 0x4, scoped, tag = 'scoped memory for tpu_custom_call.1']
    #allocation5 [shape = 'u8[4096]{0}', space=vmem, size = 0x1000, scoped, tag = 'output window, operand 0, single buffered']
    %6 = vsyncpa [#allocation3], 0
    %7 = vsyncpa [#allocation4], 0
    // Predicated region
    $region2: #{tpu_custom_call.1} parent=1 // pred_check
      _
    $region3: #{tpu_custom_call.1} parent=1 // pred_check_branch
      %9 = sbr.rel (0) target = $region5
    $region4: #{tpu_custom_call.1} parent=1 // pred_region
      %11 = vsyncadd [#allocation3], 0
      %s13 = sshll.u32 %s0, 4
      %s14 = int_to_ptr.hbm [resolvable:$true] %s13
      %s15 = sshll.u32 [#allocation2], 4
      %s16 = int_to_ptr.vmem [resolvable:$true] %s15
      %18 = dma.hbm_to_vmem [thread:$0]  %s14, 128, %s16, [#allocation3]
    $region5: #{tpu_custom_call.1} parent=1 // pred_fallthru
      _
    // Predicated region
    $region6: #{tpu_custom_call.1} parent=1 // pred_check
      _
    $region7: #{tpu_custom_call.1} parent=1 // pred_check_branch
      %20 = sbr.rel (0) target = $region9
    $region8: #{tpu_custom_call.1} parent=1 // pred_region
      %22 = dma.done [#allocation3], 128
    $region9: #{tpu_custom_call.1} parent=1 // pred_fallthru
      _
    %s23 = smul.u32 0, 8
    %v24 = vlaneseq
    %v25 = vand.u32 %v24, 127
    %s26 = sadd.s32 %s23, 7
    %v27 = vstv %s26
    %v28 = vsub.s32 %v27, %v25
    %vm29 = vcmp.gt.s32.totalorder %v28, 0
    %v30 = vsel %vm29, %v28, 0
    %vm31 = vcmp.lt.s32.totalorder %v30, 16
    %vm32 = vcmp.gt.s32.totalorder %v30, 1
    %v33 = vsel %vm32, %v30, 1
    %v34 = vcvt.s32.f32 %v33
    %v35 = vrcp.pop 16.0
    %v36 = vmul.f32 16.0, %v35
    %v37 = vsub.f32 1.0, %v36
    %v38 = vmul.f32 %v35, %v37
    %v39 = vadd.f32 %v35, %v38
    %vm40 = vweird.f32 %v35
    %v41 = vsel %vm40, %v35, %v39
    %v42 = vmul.f32 %v34, %v41
    %v43 = vlog2.pop %v42
    %v44 = vmul.f32 %v43, 0.6931472
    %v45 = vrcp.pop 2.0794415
    %v46 = vmul.f32 2.0794415, %v45
    %v47 = vsub.f32 1.0, %v46
    %v48 = vmul.f32 %v45, %v47
    %v49 = vadd.f32 %v45, %v48
    %vm50 = vweird.f32 %v45
    %v51 = vsel %vm50, %v45, %v49
    %v52 = vmul.f32 %v44, %v51
    %v53 = vmul.f32 %v52, 16.0
    %v54 = vcvt.f32.s32.to.zero.pseudo %v53
    %v55 = vadd.s32 %v54, 16
    %vm56 = vcmp.lt.s32.totalorder %v55, 31
    %v57 = vsel %vm56, %v55, 31
    %v58 = vsel %vm31, %v30, %v57
    %v59 = vld [vmem:[#allocation2] sm:$0xff]
    %vm60 = vcmp.eq.s32.totalorder %v58, 0
    %62 = vset.pattern.permute.xlu0 0
    %63 = vperm.xlu0 %62, %v59
    %v64 = vpop.permute.xlu0 %63
    %v66 = vsel %vm60, %v64, 0.0
    %vm67 = vcmp.eq.s32.totalorder %v58, 1
    %68 = vset.pattern.permute.xlu0 1
    %69 = vperm.xlu0 %68, %v59
    %v70 = vpop.permute.xlu0 %69
    %v72 = vsel %vm67, %v70, %v66
    %vm73 = vcmp.eq.s32.totalorder %v58, 2
    %74 = vset.pattern.permute.xlu0 2
    %75 = vperm.xlu0 %74, %v59
    %v76 = vpop.permute.xlu0 %75
    %v78 = vsel %vm73, %v76, %v72
    %vm79 = vcmp.eq.s32.totalorder %v58, 3
    %80 = vset.pattern.permute.xlu0 3
    %81 = vperm.xlu0 %80, %v59
    %v82 = vpop.permute.xlu0 %81
    %v84 = vsel %vm79, %v82, %v78
    %vm85 = vcmp.eq.s32.totalorder %v58, 4
    %86 = vset.pattern.permute.xlu0 4
    %87 = vperm.xlu0 %86, %v59
    %v88 = vpop.permute.xlu0 %87
    %v90 = vsel %vm85, %v88, %v84
    %vm91 = vcmp.eq.s32.totalorder %v58, 5
    %92 = vset.pattern.permute.xlu0 5
    %93 = vperm.xlu0 %92, %v59
    %v94 = vpop.permute.xlu0 %93
    %v96 = vsel %vm91, %v94, %v90
    %vm97 = vcmp.eq.s32.totalorder %v58, 6
    %98 = vset.pattern.permute.xlu0 6
    %99 = vperm.xlu0 %98, %v59
    %v100 = vpop.permute.xlu0 %99
    %v102 = vsel %vm97, %v100, %v96
    %vm103 = vcmp.eq.s32.totalorder %v58, 7
    %104 = vset.pattern.permute.xlu0 7
    %105 = vperm.xlu0 %104, %v59
    %v106 = vpop.permute.xlu0 %105
    %v108 = vsel %vm103, %v106, %v102
    %vm109 = vcmp.eq.s32.totalorder %v58, 8
    %110 = vset.pattern.permute.xlu0 8
    %111 = vperm.xlu0 %110, %v59
    %v112 = vpop.permute.xlu0 %111
    %v114 = vsel %vm109, %v112, %v108
    %vm115 = vcmp.eq.s32.totalorder %v58, 9
    %116 = vset.pattern.permute.xlu0 9
    %117 = vperm.xlu0 %116, %v59
    %v118 = vpop.permute.xlu0 %117
    %v120 = vsel %vm115, %v118, %v114
    %vm121 = vcmp.eq.s32.totalorder %v58, 10
    %122 = vset.pattern.permute.xlu0 10
    %123 = vperm.xlu0 %122, %v59
    %v124 = vpop.permute.xlu0 %123
    %v126 = vsel %vm121, %v124, %v120
    %vm127 = vcmp.eq.s32.totalorder %v58, 11
    %128 = vset.pattern.permute.xlu0 11
    %129 = vperm.xlu0 %128, %v59
    %v130 = vpop.permute.xlu0 %129
    %v132 = vsel %vm127, %v130, %v126
    %vm133 = vcmp.eq.s32.totalorder %v58, 12
    %134 = vset.pattern.permute.xlu0 12
    %135 = vperm.xlu0 %134, %v59
    %v136 = vpop.permute.xlu0 %135
    %v138 = vsel %vm133, %v136, %v132
    %vm139 = vcmp.eq.s32.totalorder %v58, 13
    %140 = vset.pattern.permute.xlu0 13
    %141 = vperm.xlu0 %140, %v59
    %v142 = vpop.permute.xlu0 %141
    %v144 = vsel %vm139, %v142, %v138
    %vm145 = vcmp.eq.s32.totalorder %v58, 14
    %146 = vset.pattern.permute.xlu0 14
    %147 = vperm.xlu0 %146, %v59
    %v148 = vpop.permute.xlu0 %147
    %v150 = vsel %vm145, %v148, %v144
    %vm151 = vcmp.eq.s32.totalorder %v58, 15
    %152 = vset.pattern.permute.xlu0 15
    %153 = vperm.xlu0 %152, %v59
    %v154 = vpop.permute.xlu0 %153
    %v156 = vsel %vm151, %v154, %v150
    %vm157 = vcmp.eq.s32.totalorder %v58, 16
    %158 = vset.pattern.permute.xlu0 16
    %159 = vperm.xlu0 %158, %v59
    %v160 = vpop.permute.xlu0 %159
    %v162 = vsel %vm157, %v160, %v156
    %vm163 = vcmp.eq.s32.totalorder %v58, 17
    %164 = vset.pattern.permute.xlu0 17
    %165 = vperm.xlu0 %164, %v59
    %v166 = vpop.permute.xlu0 %165
    %v168 = vsel %vm163, %v166, %v162
    %vm169 = vcmp.eq.s32.totalorder %v58, 18
    %170 = vset.pattern.permute.xlu0 18
    %171 = vperm.xlu0 %170, %v59
    %v172 = vpop.permute.xlu0 %171
    %v174 = vsel %vm169, %v172, %v168
    %vm175 = vcmp.eq.s32.totalorder %v58, 19
    %176 = vset.pattern.permute.xlu0 19
    %177 = vperm.xlu0 %176, %v59
    %v178 = vpop.permute.xlu0 %177
    %v180 = vsel %vm175, %v178, %v174
    %vm181 = vcmp.eq.s32.totalorder %v58, 20
    %182 = vset.pattern.permute.xlu0 20
    %183 = vperm.xlu0 %182, %v59
    %v184 = vpop.permute.xlu0 %183
    %v186 = vsel %vm181, %v184, %v180
    %vm187 = vcmp.eq.s32.totalorder %v58, 21
    %188 = vset.pattern.permute.xlu0 21
    %189 = vperm.xlu0 %188, %v59
    %v190 = vpop.permute.xlu0 %189
    %v192 = vsel %vm187, %v190, %v186
    %vm193 = vcmp.eq.s32.totalorder %v58, 22
    %194 = vset.pattern.permute.xlu0 22
    %195 = vperm.xlu0 %194, %v59
    %v196 = vpop.permute.xlu0 %195
    %v198 = vsel %vm193, %v196, %v192
    %vm199 = vcmp.eq.s32.totalorder %v58, 23
    %200 = vset.pattern.permute.xlu0 23
    %201 = vperm.xlu0 %200, %v59
    %v202 = vpop.permute.xlu0 %201
    %v204 = vsel %vm199, %v202, %v198
    %vm205 = vcmp.eq.s32.totalorder %v58, 24
    %206 = vset.pattern.permute.xlu0 24
    %207 = vperm.xlu0 %206, %v59
    %v208 = vpop.permute.xlu0 %207
    %v210 = vsel %vm205, %v208, %v204
    %vm211 = vcmp.eq.s32.totalorder %v58, 25
    %212 = vset.pattern.permute.xlu0 25
    %213 = vperm.xlu0 %212, %v59
    %v214 = vpop.permute.xlu0 %213
    %v216 = vsel %vm211, %v214, %v210
    %vm217 = vcmp.eq.s32.totalorder %v58, 26
    %218 = vset.pattern.permute.xlu0 26
    %219 = vperm.xlu0 %218, %v59
    %v220 = vpop.permute.xlu0 %219
    %v222 = vsel %vm217, %v220, %v216
    %vm223 = vcmp.eq.s32.totalorder %v58, 27
    %224 = vset.pattern.permute.xlu0 27
    %225 = vperm.xlu0 %224, %v59
    %v226 = vpop.permute.xlu0 %225
    %v228 = vsel %vm223, %v226, %v222
    %vm229 = vcmp.eq.s32.totalorder %v58, 28
    %230 = vset.pattern.permute.xlu0 28
    %231 = vperm.xlu0 %230, %v59
    %v232 = vpop.permute.xlu0 %231
    %v234 = vsel %vm229, %v232, %v228
    %vm235 = vcmp.eq.s32.totalorder %v58, 29
    %236 = vset.pattern.permute.xlu0 29
    %237 = vperm.xlu0 %236, %v59
    %v238 = vpop.permute.xlu0 %237
    %v240 = vsel %vm235, %v238, %v234
    %vm241 = vcmp.eq.s32.totalorder %v58, 30
    %242 = vset.pattern.permute.xlu0 30
    %243 = vperm.xlu0 %242, %v59
    %v244 = vpop.permute.xlu0 %243
    %v246 = vsel %vm241, %v244, %v240
    %vm247 = vcmp.eq.s32.totalorder %v58, 31
    %248 = vset.pattern.permute.xlu0 31
    %249 = vperm.xlu0 %248, %v59
    %v250 = vpop.permute.xlu0 %249
    %v252 = vsel %vm247, %v250, %v246
    %254 = vrot.lane.b32.xlu0 %v252, 121
    %v255 = vpop.permute.xlu0 %254
    %vm257 = vcmask 130048
    %258 = vst.msk [vmem:[#allocation5] sm:$0xff] %vm257, %v255
    %259 = vrot.lane.b32.xlu0 %v252, 10
    %v260 = vpop.permute.xlu0 %259
    %vm262 = vcmask 261248
    %263 = vst.msk [vmem:[#allocation5] sm:$0xff] %vm262, %v260
    %264 = vrot.lane.b32.xlu0 %v252, 27
    %v265 = vpop.permute.xlu0 %264
    %vm267 = vcmask 392448
    %268 = vst.msk [vmem:[#allocation5] sm:$0xff] %vm267, %v265
    %269 = vrot.lane.b32.xlu0 %v252, 44
    %v270 = vpop.permute.xlu0 %269
    %vm272 = vcmask 523648
    %273 = vst.msk [vmem:[#allocation5] sm:$0xff] %vm272, %v270
    %274 = vrot.lane.b32.xlu0 %v252, 61
    %v275 = vpop.permute.xlu0 %274
    %vm277 = vcmask 654848
    %278 = vst.msk [vmem:[#allocation5] sm:$0xff] %vm277, %v275
    %279 = vrot.lane.b32.xlu0 %v252, 78
    %v280 = vpop.permute.xlu0 %279
    %vm282 = vcmask 786048
    %283 = vst.msk [vmem:[#allocation5] sm:$0xff] %vm282, %v280
    %284 = vrot.lane.b32.xlu0 %v252, 95
    %v285 = vpop.permute.xlu0 %284
    %vm287 = vcmask 917248
    %288 = vst.msk [vmem:[#allocation5] sm:$0xff] %vm287, %v285
    %289 = vrot.lane.b32.xlu0 %v252, 112
    %v290 = vpop.permute.xlu0 %289
    %vm292 = vcmask 1048448
    %293 = vst.msk [vmem:[#allocation5] sm:$0xff] %vm292, %v290
    // Predicated region
    $region10: #{tpu_custom_call.1} parent=1 // pred_check
      _
    $region11: #{tpu_custom_call.1} parent=1 // pred_check_branch
      %295 = sbr.rel (0) target = $region13
    $region12: #{tpu_custom_call.1} parent=1 // pred_region
      %297 = vsyncadd [#allocation4], 0
      %s299 = sshll.u32 [#allocation5], 4
      %s300 = int_to_ptr.vmem [resolvable:$true] %s299
      %s301 = sshll.u32 %s1, 4
      %s302 = int_to_ptr.hbm [resolvable:$true] %s301
      %304 = dma.vmem_to_hbm [thread:$0]  %s300, 128, %s302, [#allocation4]
    $region13: #{tpu_custom_call.1} parent=1 // pred_fallthru
      _
    // Predicated region
    $region14: #{tpu_custom_call.1} parent=1 // pred_check
      _
    $region15: #{tpu_custom_call.1} parent=1 // pred_check_branch
      %306 = sbr.rel (0) target = $region17
    $region16: #{tpu_custom_call.1} parent=1 // pred_region
      %308 = dma.done [#allocation4], 128
    $region17: #{tpu_custom_call.1} parent=1 // pred_fallthru
      _
    %309 = vsyncpa [#allocation3], 1
    %310 = vsyncpa [#allocation4], 1

</llo_original>
